<compile_context>
chip_gen: v6e
topology: v6e:2x2x1
jax: 0.10.0
libtpu: 0.0.40
codegen_flags: <defaults>
</compile_context>

<pallas_src>
import jax
import jax.numpy as jnp
from jax.experimental import pallas as pl
from jax.experimental.pallas import tpu as pltpu


def lstm_actor_kernel(
    obs_ref,      # [T, obs_dim]   f32
    w_in_ref,     # [obs_dim, H]   bf16
    b_in_ref,     # [1, H]         f32
    w_ih_ref,     # [H, 4L]        bf16
    w_hh_ref,     # [L, 4L]        bf16
    b_g_ref,      # [1, 4L]        f32   (pre-summed b_ih + b_hh)
    w_out_ref,    # [L, act_dim]   bf16
    b_out_ref,    # [1, act_dim]   f32
    act_ref,      # out: [T, act_dim] f32
    h_out_ref,    # out: [1, L]    f32
    c_out_ref,    # out: [1, L]    f32
    h0_ref=None, c0_ref=None,  # placeholders overwritten below (see signature order)
):
    raise NotImplementedError  # replaced below


# NOTE: real kernel (argument order: 10 inputs, then 3 outputs).
def lstm_actor_kernel(  # noqa: F811
    obs_ref,      # [T, obs_dim]   f32
    w_in_ref,     # [obs_dim, H]   bf16
    b_in_ref,     # [1, H]         f32
    w_ih_ref,     # [H, 4L]        bf16
    w_hh_ref,     # [L, 4L]        bf16
    b_g_ref,      # [1, 4L]        f32   (pre-summed b_ih + b_hh)
    w_out_ref,    # [L, act_dim]   bf16
    b_out_ref,    # [1, act_dim]   f32
    h0_ref,       # [1, L]         f32
    c0_ref,       # [1, L]         f32
    act_ref,      # out: [T, act_dim] f32
    h_out_ref,    # out: [1, L]    f32
    c_out_ref,    # out: [1, L]    f32
):
    T = obs_ref.shape[0]
    L = h0_ref.shape[1]

    # --- input layer: x = tanh(obs @ W_in + b_in)  (bf16 MXU, f32 acc) ---
    xh = jnp.tanh(
        jnp.dot(obs_ref[...].astype(jnp.bfloat16), w_in_ref[...],
                preferred_element_type=jnp.float32)
        + b_in_ref[...]
    )                                                   # [T, H] f32

    # --- hoisted input-to-hidden projection for all time steps at once ---
    # xg[t] = x_t @ W_ih + (b_ih + b_hh); only h @ W_hh remains per step.
    xg = (
        jnp.dot(xh.astype(jnp.bfloat16), w_ih_ref[...],
                preferred_element_type=jnp.float32)
        + b_g_ref[...]
    )                                                   # [T, 4L] f32

    w_hh = w_hh_ref[...]                                # bf16, ~2 vregs resident
    h = h0_ref[...]                                     # [1, L] f32
    c = c0_ref[...]                                     # [1, L] f32

    # --- LSTM recurrence, fully unrolled (T is compile-time static) ---
    hs_rows = []
    for t in range(T):
        gates = xg[t:t + 1, :] + jnp.dot(
            h.astype(jnp.bfloat16), w_hh, preferred_element_type=jnp.float32
        )                                               # [1, 4L], order i,f,g,o
        sig = jax.nn.sigmoid(gates)                     # one EUP push, full vreg
        tnh = jnp.tanh(gates)                           # one EUP push, full vreg
        i_g = sig[:, 0 * L:1 * L]
        f_g = sig[:, 1 * L:2 * L]
        g_g = tnh[:, 2 * L:3 * L]
        o_g = sig[:, 3 * L:4 * L]
        c = f_g * c + i_g * g_g                         # f32 elementwise
        h = o_g * jnp.tanh(c)                           # f32 elementwise
        hs_rows.append(h)                               # stays in vregs

    h_out_ref[...] = h
    c_out_ref[...] = c

    # --- output layer on the vreg-resident hidden rows (no VMEM round trip) ---
    hs = jnp.concatenate(hs_rows, axis=0)               # [T, L] — one vreg at T=8, L=32
    # act_dim=1 means an N=1 matmul / lane-width-1 store; negligible at [8,1].
    act_ref[...] = (
        jnp.dot(hs.astype(jnp.bfloat16), w_out_ref[...],
                preferred_element_type=jnp.float32)
        + b_out_ref[...]
    )


def lstm_actor_forward(observation, lstm_hidden, params):
    """observation: [T, obs_dim] f32; lstm_hidden: (h0, c0) each [1, lstm_size]."""
    T, obs_dim = observation.shape
    hidden = params["w_in"].shape[1]
    lstm = params["w_hh"].shape[0]
    act_dim = params["w_out"].shape[1]
    assert hidden == lstm, "module usage requires hidden_size == lstm_size"

    h0, c0 = lstm_hidden

    # One-time parameter prep outside the kernel: bf16 weights for the MXU,
    # f32 biases, LSTM biases pre-summed.
    w_in = params["w_in"].astype(jnp.bfloat16)
    w_ih = params["w_ih"].astype(jnp.bfloat16)
    w_hh = params["w_hh"].astype(jnp.bfloat16)
    w_out = params["w_out"].astype(jnp.bfloat16)
    b_gates = (params["b_ih"] + params["b_hh"]).astype(jnp.float32)

    vmem = pl.BlockSpec(memory_space=pltpu.MemorySpace.VMEM)

    action, h_out, c_out = pl.pallas_call(
        lstm_actor_kernel,
        out_shape=(
            jax.ShapeDtypeStruct((T, act_dim), jnp.float32),
            jax.ShapeDtypeStruct((1, lstm), jnp.float32),
            jax.ShapeDtypeStruct((1, lstm), jnp.float32),
        ),
        in_specs=[vmem] * 10,
        out_specs=(vmem, vmem, vmem),
    )(
        observation.astype(jnp.float32),
        w_in, params["b_in"].astype(jnp.float32),
        w_ih, w_hh, b_gates,
        w_out, params["b_out"].astype(jnp.float32),
        h0.astype(jnp.float32), c0.astype(jnp.float32),
    )
    # torch returns hidden states shaped (num_layers=1, batch=1, lstm_size)
    return action, (h_out.reshape(1, 1, lstm), c_out.reshape(1, 1, lstm))


def lstm_actor_reference(observation, lstm_hidden, params):
    """Pure-JAX f32 reference with torch.nn.LSTM semantics."""
    L = params["w_hh"].shape[0]
    x = jnp.tanh(observation @ params["w_in"] + params["b_in"])
    h, c = lstm_hidden
    b = params["b_ih"] + params["b_hh"]
    hs = []
    for t in range(x.shape[0]):
        gates = x[t:t + 1] @ params["w_ih"] + h @ params["w_hh"] + b
        i_g = jax.nn.sigmoid(gates[:, 0 * L:1 * L])
        f_g = jax.nn.sigmoid(gates[:, 1 * L:2 * L])
        g_g = jnp.tanh(gates[:, 2 * L:3 * L])
        o_g = jax.nn.sigmoid(gates[:, 3 * L:4 * L])
        c = f_g * c + i_g * g_g
        h = o_g * jnp.tanh(c)
        hs.append(h)
    hs = jnp.concatenate(hs, axis=0)
    action = hs @ params["w_out"] + params["b_out"]
    return action, (h.reshape(1, 1, L), c.reshape(1, 1, L))


def init_params(key, obs_dim, act_dim, hidden_size, lstm_size):
    ks = jax.random.split(key, 9)
    scale = 0.1
    return {
        "w_in": scale * jax.random.normal(ks[0], (obs_dim, hidden_size), jnp.float32),
        "b_in": scale * jax.random.normal(ks[1], (1, hidden_size), jnp.float32),
        "w_ih": scale * jax.random.normal(ks[2], (hidden_size, 4 * lstm_size), jnp.float32),
        "w_hh": scale * jax.random.normal(ks[3], (lstm_size, 4 * lstm_size), jnp.float32),
        "b_ih": scale * jax.random.normal(ks[4], (1, 4 * lstm_size), jnp.float32),
        "b_hh": scale * jax.random.normal(ks[5], (1, 4 * lstm_size), jnp.float32),
        "w_out": scale * jax.random.normal(ks[6], (lstm_size, act_dim), jnp.float32),
        "b_out": scale * jax.random.normal(ks[7], (1, act_dim), jnp.float32),
    }


if __name__ == "__main__":
    # small shapes: obs_dim=3 (time, altitude, distance), act_dim=1,
    # hidden_size = lstm_size = 32, sequence length T = 8
    obs_dim, act_dim, hidden_size, lstm_size, T = 3, 1, 32, 32, 8

    key = jax.random.PRNGKey(0)
    k_obs, k_h, k_c, k_par = jax.random.split(key, 4)

    observation = jax.random.normal(k_obs, (T, obs_dim), jnp.float32)
    h0 = jax.random.normal(k_h, (1, lstm_size), jnp.float32)
    c0 = jax.random.normal(k_c, (1, lstm_size), jnp.float32)
    params = init_params(k_par, obs_dim, act_dim, hidden_size, lstm_size)

    fwd = jax.jit(lstm_actor_forward)
    action, (h_n, c_n) = fwd(observation, (h0, c0), params)
    jax.block_until_ready((action, h_n, c_n))

    assert action.shape == (T, act_dim)
    assert h_n.shape == (1, 1, lstm_size) and c_n.shape == (1, 1, lstm_size)

    # Sanity check vs. a pure-JAX f32 reference (loose tolerance: the kernel
    # intentionally feeds bf16 operands to the MXU, per the perf review).
    ref_action, (ref_h, ref_c) = lstm_actor_reference(observation, (h0, c0), params)
    assert jnp.allclose(action, ref_action, rtol=5e-2, atol=5e-2)
    assert jnp.allclose(h_n, ref_h, rtol=5e-2, atol=5e-2)
    assert jnp.allclose(c_n, ref_c, rtol=5e-2, atol=5e-2)

    print("KERNEL_OK")
</pallas_src>

<mosaic_0001>
module attributes {stable_mosaic.version = 11 : i64} {
  func.func @lstm_actor_kernel(%arg0: memref<8x3xf32, #tpu.memory_space<vmem>>, %arg1: memref<3x32xbf16, #tpu.memory_space<vmem>>, %arg2: memref<1x32xf32, #tpu.memory_space<vmem>>, %arg3: memref<32x128xbf16, #tpu.memory_space<vmem>>, %arg4: memref<32x128xbf16, #tpu.memory_space<vmem>>, %arg5: memref<1x128xf32, #tpu.memory_space<vmem>>, %arg6: memref<32x1xbf16, #tpu.memory_space<vmem>>, %arg7: memref<1x1xf32, #tpu.memory_space<vmem>>, %arg8: memref<1x32xf32, #tpu.memory_space<vmem>>, %arg9: memref<1x32xf32, #tpu.memory_space<vmem>>, %arg10: memref<8x1xf32, #tpu.memory_space<vmem>>, %arg11: memref<1x32xf32, #tpu.memory_space<vmem>>, %arg12: memref<1x32xf32, #tpu.memory_space<vmem>>) attributes {dimension_semantics = [], scalar_prefetch = 0 : i64, scratch_operands = 0 : i64, tpu.core_type = #tpu.core_type<tc>} {
    %c0 = arith.constant 0 : index
    %c0_0 = arith.constant 0 : index
    %0 = vector.load %arg0[%c0, %c0_0] : memref<8x3xf32, #tpu.memory_space<vmem>>, vector<8x3xf32>
    %1 = arith.truncf %0 : vector<8x3xf32> to vector<8x3xbf16>
    %c0_1 = arith.constant 0 : index
    %c0_2 = arith.constant 0 : index
    %2 = vector.load %arg1[%c0_1, %c0_2] : memref<3x32xbf16, #tpu.memory_space<vmem>>, vector<3x32xbf16>
    %cst = arith.constant dense<0.000000e+00> : vector<8x32xf32>
    %3 = tpu.matmul %1, %2, %cst {dimension_numbers = #tpu.dot_dimension_numbers<[1], [0], [0], [1], [0, 0, 1, 1], [], []>} : vector<8x3xbf16>, vector<3x32xbf16>, vector<8x32xf32> -> vector<8x32xf32>
    %c0_3 = arith.constant 0 : index
    %c0_4 = arith.constant 0 : index
    %4 = vector.load %arg2[%c0_3, %c0_4] : memref<1x32xf32, #tpu.memory_space<vmem>>, vector<1x32xf32>
    %5 = vector.broadcast %4 : vector<1x32xf32> to vector<8x32xf32>
    %6 = arith.addf %3, %5 : vector<8x32xf32>
    %7 = math.tanh %6 : vector<8x32xf32>
    %8 = arith.truncf %7 : vector<8x32xf32> to vector<8x32xbf16>
    %c0_5 = arith.constant 0 : index
    %c0_6 = arith.constant 0 : index
    %9 = vector.load %arg3[%c0_5, %c0_6] : memref<32x128xbf16, #tpu.memory_space<vmem>>, vector<32x128xbf16>
    %cst_7 = arith.constant dense<0.000000e+00> : vector<8x128xf32>
    %10 = tpu.matmul %8, %9, %cst_7 {dimension_numbers = #tpu.dot_dimension_numbers<[1], [0], [0], [1], [0, 0, 1, 1], [], []>} : vector<8x32xbf16>, vector<32x128xbf16>, vector<8x128xf32> -> vector<8x128xf32>
    %c0_8 = arith.constant 0 : index
    %c0_9 = arith.constant 0 : index
    %11 = vector.load %arg5[%c0_8, %c0_9] : memref<1x128xf32, #tpu.memory_space<vmem>>, vector<1x128xf32>
    %12 = vector.broadcast %11 : vector<1x128xf32> to vector<8x128xf32>
    %13 = arith.addf %10, %12 : vector<8x128xf32>
    %c0_10 = arith.constant 0 : index
    %c0_11 = arith.constant 0 : index
    %14 = vector.load %arg4[%c0_10, %c0_11] : memref<32x128xbf16, #tpu.memory_space<vmem>>, vector<32x128xbf16>
    %c0_12 = arith.constant 0 : index
    %c0_13 = arith.constant 0 : index
    %15 = vector.load %arg8[%c0_12, %c0_13] : memref<1x32xf32, #tpu.memory_space<vmem>>, vector<1x32xf32>
    %c0_14 = arith.constant 0 : index
    %c0_15 = arith.constant 0 : index
    %16 = vector.load %arg9[%c0_14, %c0_15] : memref<1x32xf32, #tpu.memory_space<vmem>>, vector<1x32xf32>
    %17 = vector.extract_strided_slice %13 {offsets = [0, 0], sizes = [1, 128], strides = [1, 1]} : vector<8x128xf32> to vector<1x128xf32>
    %18 = arith.truncf %15 : vector<1x32xf32> to vector<1x32xbf16>
    %cst_16 = arith.constant dense<0.000000e+00> : vector<1x128xf32>
    %19 = tpu.matmul %18, %14, %cst_16 {dimension_numbers = #tpu.dot_dimension_numbers<[1], [0], [0], [1], [0, 0, 1, 1], [], []>} : vector<1x32xbf16>, vector<32x128xbf16>, vector<1x128xf32> -> vector<1x128xf32>
    %20 = arith.addf %17, %19 : vector<1x128xf32>
    %21 = arith.negf %20 : vector<1x128xf32>
    %22 = math.exp %21 : vector<1x128xf32>
    %cst_17 = arith.constant 1.000000e+00 : f32
    %23 = vector.broadcast %cst_17 : f32 to vector<1x128xf32>
    %24 = arith.addf %23, %22 : vector<1x128xf32>
    %25 = arith.divf %23, %24 : vector<1x128xf32>
    %26 = math.tanh %20 : vector<1x128xf32>
    %27 = vector.extract_strided_slice %25 {offsets = [0, 0], sizes = [1, 32], strides = [1, 1]} : vector<1x128xf32> to vector<1x32xf32>
    %28 = vector.extract_strided_slice %25 {offsets = [0, 32], sizes = [1, 32], strides = [1, 1]} : vector<1x128xf32> to vector<1x32xf32>
    %29 = vector.extract_strided_slice %26 {offsets = [0, 64], sizes = [1, 32], strides = [1, 1]} : vector<1x128xf32> to vector<1x32xf32>
    %30 = vector.extract_strided_slice %25 {offsets = [0, 96], sizes = [1, 32], strides = [1, 1]} : vector<1x128xf32> to vector<1x32xf32>
    %31 = arith.mulf %28, %16 : vector<1x32xf32>
    %32 = arith.mulf %27, %29 : vector<1x32xf32>
    %33 = arith.addf %31, %32 : vector<1x32xf32>
    %34 = math.tanh %33 : vector<1x32xf32>
    %35 = arith.mulf %30, %34 : vector<1x32xf32>
    %36 = vector.extract_strided_slice %13 {offsets = [1, 0], sizes = [1, 128], strides = [1, 1]} : vector<8x128xf32> to vector<1x128xf32>
    %37 = arith.truncf %35 : vector<1x32xf32> to vector<1x32xbf16>
    %cst_18 = arith.constant dense<0.000000e+00> : vector<1x128xf32>
    %38 = tpu.matmul %37, %14, %cst_18 {dimension_numbers = #tpu.dot_dimension_numbers<[1], [0], [0], [1], [0, 0, 1, 1], [], []>} : vector<1x32xbf16>, vector<32x128xbf16>, vector<1x128xf32> -> vector<1x128xf32>
    %39 = arith.addf %36, %38 : vector<1x128xf32>
    %40 = arith.negf %39 : vector<1x128xf32>
    %41 = math.exp %40 : vector<1x128xf32>
    %cst_19 = arith.constant 1.000000e+00 : f32
    %42 = vector.broadcast %cst_19 : f32 to vector<1x128xf32>
    %43 = arith.addf %42, %41 : vector<1x128xf32>
    %44 = arith.divf %42, %43 : vector<1x128xf32>
    %45 = math.tanh %39 : vector<1x128xf32>
    %46 = vector.extract_strided_slice %44 {offsets = [0, 0], sizes = [1, 32], strides = [1, 1]} : vector<1x128xf32> to vector<1x32xf32>
    %47 = vector.extract_strided_slice %44 {offsets = [0, 32], sizes = [1, 32], strides = [1, 1]} : vector<1x128xf32> to vector<1x32xf32>
    %48 = vector.extract_strided_slice %45 {offsets = [0, 64], sizes = [1, 32], strides = [1, 1]} : vector<1x128xf32> to vector<1x32xf32>
    %49 = vector.extract_strided_slice %44 {offsets = [0, 96], sizes = [1, 32], strides = [1, 1]} : vector<1x128xf32> to vector<1x32xf32>
    %50 = arith.mulf %47, %33 : vector<1x32xf32>
    %51 = arith.mulf %46, %48 : vector<1x32xf32>
    %52 = arith.addf %50, %51 : vector<1x32xf32>
    %53 = math.tanh %52 : vector<1x32xf32>
    %54 = arith.mulf %49, %53 : vector<1x32xf32>
    %55 = vector.extract_strided_slice %13 {offsets = [2, 0], sizes = [1, 128], strides = [1, 1]} : vector<8x128xf32> to vector<1x128xf32>
    %56 = arith.truncf %54 : vector<1x32xf32> to vector<1x32xbf16>
    %cst_20 = arith.constant dense<0.000000e+00> : vector<1x128xf32>
    %57 = tpu.matmul %56, %14, %cst_20 {dimension_numbers = #tpu.dot_dimension_numbers<[1], [0], [0], [1], [0, 0, 1, 1], [], []>} : vector<1x32xbf16>, vector<32x128xbf16>, vector<1x128xf32> -> vector<1x128xf32>
    %58 = arith.addf %55, %57 : vector<1x128xf32>
    %59 = arith.negf %58 : vector<1x128xf32>
    %60 = math.exp %59 : vector<1x128xf32>
    %cst_21 = arith.constant 1.000000e+00 : f32
    %61 = vector.broadcast %cst_21 : f32 to vector<1x128xf32>
    %62 = arith.addf %61, %60 : vector<1x128xf32>
    %63 = arith.divf %61, %62 : vector<1x128xf32>
    %64 = math.tanh %58 : vector<1x128xf32>
    %65 = vector.extract_strided_slice %63 {offsets = [0, 0], sizes = [1, 32], strides = [1, 1]} : vector<1x128xf32> to vector<1x32xf32>
    %66 = vector.extract_strided_slice %63 {offsets = [0, 32], sizes = [1, 32], strides = [1, 1]} : vector<1x128xf32> to vector<1x32xf32>
    %67 = vector.extract_strided_slice %64 {offsets = [0, 64], sizes = [1, 32], strides = [1, 1]} : vector<1x128xf32> to vector<1x32xf32>
    %68 = vector.extract_strided_slice %63 {offsets = [0, 96], sizes = [1, 32], strides = [1, 1]} : vector<1x128xf32> to vector<1x32xf32>
    %69 = arith.mulf %66, %52 : vector<1x32xf32>
    %70 = arith.mulf %65, %67 : vector<1x32xf32>
    %71 = arith.addf %69, %70 : vector<1x32xf32>
    %72 = math.tanh %71 : vector<1x32xf32>
    %73 = arith.mulf %68, %72 : vector<1x32xf32>
    %74 = vector.extract_strided_slice %13 {offsets = [3, 0], sizes = [1, 128], strides = [1, 1]} : vector<8x128xf32> to vector<1x128xf32>
    %75 = arith.truncf %73 : vector<1x32xf32> to vector<1x32xbf16>
    %cst_22 = arith.constant dense<0.000000e+00> : vector<1x128xf32>
    %76 = tpu.matmul %75, %14, %cst_22 {dimension_numbers = #tpu.dot_dimension_numbers<[1], [0], [0], [1], [0, 0, 1, 1], [], []>} : vector<1x32xbf16>, vector<32x128xbf16>, vector<1x128xf32> -> vector<1x128xf32>
    %77 = arith.addf %74, %76 : vector<1x128xf32>
    %78 = arith.negf %77 : vector<1x128xf32>
    %79 = math.exp %78 : vector<1x128xf32>
    %cst_23 = arith.constant 1.000000e+00 : f32
    %80 = vector.broadcast %cst_23 : f32 to vector<1x128xf32>
    %81 = arith.addf %80, %79 : vector<1x128xf32>
    %82 = arith.divf %80, %81 : vector<1x128xf32>
    %83 = math.tanh %77 : vector<1x128xf32>
    %84 = vector.extract_strided_slice %82 {offsets = [0, 0], sizes = [1, 32], strides = [1, 1]} : vector<1x128xf32> to vector<1x32xf32>
    %85 = vector.extract_strided_slice %82 {offsets = [0, 32], sizes = [1, 32], strides = [1, 1]} : vector<1x128xf32> to vector<1x32xf32>
    %86 = vector.extract_strided_slice %83 {offsets = [0, 64], sizes = [1, 32], strides = [1, 1]} : vector<1x128xf32> to vector<1x32xf32>
    %87 = vector.extract_strided_slice %82 {offsets = [0, 96], sizes = [1, 32], strides = [1, 1]} : vector<1x128xf32> to vector<1x32xf32>
    %88 = arith.mulf %85, %71 : vector<1x32xf32>
    %89 = arith.mulf %84, %86 : vector<1x32xf32>
    %90 = arith.addf %88, %89 : vector<1x32xf32>
    %91 = math.tanh %90 : vector<1x32xf32>
    %92 = arith.mulf %87, %91 : vector<1x32xf32>
    %93 = vector.extract_strided_slice %13 {offsets = [4, 0], sizes = [1, 128], strides = [1, 1]} : vector<8x128xf32> to vector<1x128xf32>
    %94 = arith.truncf %92 : vector<1x32xf32> to vector<1x32xbf16>
    %cst_24 = arith.constant dense<0.000000e+00> : vector<1x128xf32>
    %95 = tpu.matmul %94, %14, %cst_24 {dimension_numbers = #tpu.dot_dimension_numbers<[1], [0], [0], [1], [0, 0, 1, 1], [], []>} : vector<1x32xbf16>, vector<32x128xbf16>, vector<1x128xf32> -> vector<1x128xf32>
    %96 = arith.addf %93, %95 : vector<1x128xf32>
    %97 = arith.negf %96 : vector<1x128xf32>
    %98 = math.exp %97 : vector<1x128xf32>
    %cst_25 = arith.constant 1.000000e+00 : f32
    %99 = vector.broadcast %cst_25 : f32 to vector<1x128xf32>
    %100 = arith.addf %99, %98 : vector<1x128xf32>
    %101 = arith.divf %99, %100 : vector<1x128xf32>
    %102 = math.tanh %96 : vector<1x128xf32>
    %103 = vector.extract_strided_slice %101 {offsets = [0, 0], sizes = [1, 32], strides = [1, 1]} : vector<1x128xf32> to vector<1x32xf32>
    %104 = vector.extract_strided_slice %101 {offsets = [0, 32], sizes = [1, 32], strides = [1, 1]} : vector<1x128xf32> to vector<1x32xf32>
    %105 = vector.extract_strided_slice %102 {offsets = [0, 64], sizes = [1, 32], strides = [1, 1]} : vector<1x128xf32> to vector<1x32xf32>
    %106 = vector.extract_strided_slice %101 {offsets = [0, 96], sizes = [1, 32], strides = [1, 1]} : vector<1x128xf32> to vector<1x32xf32>
    %107 = arith.mulf %104, %90 : vector<1x32xf32>
    %108 = arith.mulf %103, %105 : vector<1x32xf32>
    %109 = arith.addf %107, %108 : vector<1x32xf32>
    %110 = math.tanh %109 : vector<1x32xf32>
    %111 = arith.mulf %106, %110 : vector<1x32xf32>
    %112 = vector.extract_strided_slice %13 {offsets = [5, 0], sizes = [1, 128], strides = [1, 1]} : vector<8x128xf32> to vector<1x128xf32>
    %113 = arith.truncf %111 : vector<1x32xf32> to vector<1x32xbf16>
    %cst_26 = arith.constant dense<0.000000e+00> : vector<1x128xf32>
    %114 = tpu.matmul %113, %14, %cst_26 {dimension_numbers = #tpu.dot_dimension_numbers<[1], [0], [0], [1], [0, 0, 1, 1], [], []>} : vector<1x32xbf16>, vector<32x128xbf16>, vector<1x128xf32> -> vector<1x128xf32>
    %115 = arith.addf %112, %114 : vector<1x128xf32>
    %116 = arith.negf %115 : vector<1x128xf32>
    %117 = math.exp %116 : vector<1x128xf32>
    %cst_27 = arith.constant 1.000000e+00 : f32
    %118 = vector.broadcast %cst_27 : f32 to vector<1x128xf32>
    %119 = arith.addf %118, %117 : vector<1x128xf32>
    %120 = arith.divf %118, %119 : vector<1x128xf32>
    %121 = math.tanh %115 : vector<1x128xf32>
    %122 = vector.extract_strided_slice %120 {offsets = [0, 0], sizes = [1, 32], strides = [1, 1]} : vector<1x128xf32> to vector<1x32xf32>
    %123 = vector.extract_strided_slice %120 {offsets = [0, 32], sizes = [1, 32], strides = [1, 1]} : vector<1x128xf32> to vector<1x32xf32>
    %124 = vector.extract_strided_slice %121 {offsets = [0, 64], sizes = [1, 32], strides = [1, 1]} : vector<1x128xf32> to vector<1x32xf32>
    %125 = vector.extract_strided_slice %120 {offsets = [0, 96], sizes = [1, 32], strides = [1, 1]} : vector<1x128xf32> to vector<1x32xf32>
    %126 = arith.mulf %123, %109 : vector<1x32xf32>
    %127 = arith.mulf %122, %124 : vector<1x32xf32>
    %128 = arith.addf %126, %127 : vector<1x32xf32>
    %129 = math.tanh %128 : vector<1x32xf32>
    %130 = arith.mulf %125, %129 : vector<1x32xf32>
    %131 = vector.extract_strided_slice %13 {offsets = [6, 0], sizes = [1, 128], strides = [1, 1]} : vector<8x128xf32> to vector<1x128xf32>
    %132 = arith.truncf %130 : vector<1x32xf32> to vector<1x32xbf16>
    %cst_28 = arith.constant dense<0.000000e+00> : vector<1x128xf32>
    %133 = tpu.matmul %132, %14, %cst_28 {dimension_numbers = #tpu.dot_dimension_numbers<[1], [0], [0], [1], [0, 0, 1, 1], [], []>} : vector<1x32xbf16>, vector<32x128xbf16>, vector<1x128xf32> -> vector<1x128xf32>
    %134 = arith.addf %131, %133 : vector<1x128xf32>
    %135 = arith.negf %134 : vector<1x128xf32>
    %136 = math.exp %135 : vector<1x128xf32>
    %cst_29 = arith.constant 1.000000e+00 : f32
    %137 = vector.broadcast %cst_29 : f32 to vector<1x128xf32>
    %138 = arith.addf %137, %136 : vector<1x128xf32>
    %139 = arith.divf %137, %138 : vector<1x128xf32>
    %140 = math.tanh %134 : vector<1x128xf32>
    %141 = vector.extract_strided_slice %139 {offsets = [0, 0], sizes = [1, 32], strides = [1, 1]} : vector<1x128xf32> to vector<1x32xf32>
    %142 = vector.extract_strided_slice %139 {offsets = [0, 32], sizes = [1, 32], strides = [1, 1]} : vector<1x128xf32> to vector<1x32xf32>
    %143 = vector.extract_strided_slice %140 {offsets = [0, 64], sizes = [1, 32], strides = [1, 1]} : vector<1x128xf32> to vector<1x32xf32>
    %144 = vector.extract_strided_slice %139 {offsets = [0, 96], sizes = [1, 32], strides = [1, 1]} : vector<1x128xf32> to vector<1x32xf32>
    %145 = arith.mulf %142, %128 : vector<1x32xf32>
    %146 = arith.mulf %141, %143 : vector<1x32xf32>
    %147 = arith.addf %145, %146 : vector<1x32xf32>
    %148 = math.tanh %147 : vector<1x32xf32>
    %149 = arith.mulf %144, %148 : vector<1x32xf32>
    %150 = vector.extract_strided_slice %13 {offsets = [7, 0], sizes = [1, 128], strides = [1, 1]} : vector<8x128xf32> to vector<1x128xf32>
    %151 = arith.truncf %149 : vector<1x32xf32> to vector<1x32xbf16>
    %cst_30 = arith.constant dense<0.000000e+00> : vector<1x128xf32>
    %152 = tpu.matmul %151, %14, %cst_30 {dimension_numbers = #tpu.dot_dimension_numbers<[1], [0], [0], [1], [0, 0, 1, 1], [], []>} : vector<1x32xbf16>, vector<32x128xbf16>, vector<1x128xf32> -> vector<1x128xf32>
    %153 = arith.addf %150, %152 : vector<1x128xf32>
    %154 = arith.negf %153 : vector<1x128xf32>
    %155 = math.exp %154 : vector<1x128xf32>
    %cst_31 = arith.constant 1.000000e+00 : f32
    %156 = vector.broadcast %cst_31 : f32 to vector<1x128xf32>
    %157 = arith.addf %156, %155 : vector<1x128xf32>
    %158 = arith.divf %156, %157 : vector<1x128xf32>
    %159 = math.tanh %153 : vector<1x128xf32>
    %160 = vector.extract_strided_slice %158 {offsets = [0, 0], sizes = [1, 32], strides = [1, 1]} : vector<1x128xf32> to vector<1x32xf32>
    %161 = vector.extract_strided_slice %158 {offsets = [0, 32], sizes = [1, 32], strides = [1, 1]} : vector<1x128xf32> to vector<1x32xf32>
    %162 = vector.extract_strided_slice %159 {offsets = [0, 64], sizes = [1, 32], strides = [1, 1]} : vector<1x128xf32> to vector<1x32xf32>
    %163 = vector.extract_strided_slice %158 {offsets = [0, 96], sizes = [1, 32], strides = [1, 1]} : vector<1x128xf32> to vector<1x32xf32>
    %164 = arith.mulf %161, %147 : vector<1x32xf32>
    %165 = arith.mulf %160, %162 : vector<1x32xf32>
    %166 = arith.addf %164, %165 : vector<1x32xf32>
    %167 = math.tanh %166 : vector<1x32xf32>
    %168 = arith.mulf %163, %167 : vector<1x32xf32>
    %c0_32 = arith.constant 0 : index
    %c0_33 = arith.constant 0 : index
    %169 = vector.load %arg11[%c0_32, %c0_33] : memref<1x32xf32, #tpu.memory_space<vmem>>, vector<1x32xf32>
    tpu.vector_store %arg11[%c0_32, %c0_33], %168 {strides = array<i32>} : memref<1x32xf32, #tpu.memory_space<vmem>>, vector<1x32xf32>,
    %c0_34 = arith.constant 0 : index
    %c0_35 = arith.constant 0 : index
    %170 = vector.load %arg12[%c0_34, %c0_35] : memref<1x32xf32, #tpu.memory_space<vmem>>, vector<1x32xf32>
    tpu.vector_store %arg12[%c0_34, %c0_35], %166 {strides = array<i32>} : memref<1x32xf32, #tpu.memory_space<vmem>>, vector<1x32xf32>,
    %171 = tpu.concatenate %35, %54, %73, %92, %111, %130, %149, %168 in 0 : vector<1x32xf32>, vector<1x32xf32>, vector<1x32xf32>, vector<1x32xf32>, vector<1x32xf32>, vector<1x32xf32>, vector<1x32xf32>, vector<1x32xf32> -> vector<8x32xf32>
    %172 = arith.truncf %171 : vector<8x32xf32> to vector<8x32xbf16>
    %c0_36 = arith.constant 0 : index
    %c0_37 = arith.constant 0 : index
    %173 = vector.load %arg6[%c0_36, %c0_37] : memref<32x1xbf16, #tpu.memory_space<vmem>>, vector<32x1xbf16>
    %cst_38 = arith.constant dense<0.000000e+00> : vector<8x1xf32>
    %174 = tpu.matmul %172, %173, %cst_38 {dimension_numbers = #tpu.dot_dimension_numbers<[1], [0], [0], [1], [0, 0, 1, 1], [], []>} : vector<8x32xbf16>, vector<32x1xbf16>, vector<8x1xf32> -> vector<8x1xf32>
    %c0_39 = arith.constant 0 : index
    %c0_40 = arith.constant 0 : index
    %175 = vector.load %arg7[%c0_39, %c0_40] : memref<1x1xf32, #tpu.memory_space<vmem>>, vector<1x1xf32>
    %176 = vector.broadcast %175 : vector<1x1xf32> to vector<8x1xf32>
    %177 = arith.addf %174, %176 : vector<8x1xf32>
    %c0_41 = arith.constant 0 : index
    %c0_42 = arith.constant 0 : index
    %178 = vector.load %arg10[%c0_41, %c0_42] : memref<8x1xf32, #tpu.memory_space<vmem>>, vector<8x1xf32>
    tpu.vector_store %arg10[%c0_41, %c0_42], %177 {strides = array<i32>} : memref<8x1xf32, #tpu.memory_space<vmem>>, vector<8x1xf32>,
    return
  }
}

</mosaic_0001>

<llo_original>
// kernel: lstm_actor_forward.1
$region0: #{lstm_actor_forward.1}
  #allocation0 [shape = 'u32[]', space=smem, size = 0x4, offset = 0x4, fixed_abs, tag = 'smem constant byte address 0x4 - core index']
  #allocation1 [shape = 'u32[144,128]{1,0:T(1,128)}', space=vmem, size = 0x12000, scoped, tag = 'internal scratch']
  #allocation2 [shape = 'f32[1,1]{1,0:T(1,128)S(1)}', space=vmem, size = 0x200, scoped, tag = 'scoped memory for lstm_actor_forward.1']
  %s0 = inlined_call_operand.vmem [shape: f32[8,3], index: 0, kind: input, shape index: {}]
  %s1 = inlined_call_operand.vmem [shape: bf16[3,32], index: 1, kind: input, shape index: {}]
  %s2 = inlined_call_operand.vmem [shape: f32[1,32], index: 2, kind: input, shape index: {}]
  %s3 = inlined_call_operand.vmem [shape: bf16[32,128], index: 3, kind: input, shape index: {}]
  %s4 = inlined_call_operand.vmem [shape: bf16[32,128], index: 4, kind: input, shape index: {}]
  %s5 = inlined_call_operand.vmem [shape: f32[1,128], index: 5, kind: input, shape index: {}]
  %s6 = inlined_call_operand.vmem [shape: bf16[32,1], index: 6, kind: input, shape index: {}]
  %s7 = inlined_call_operand.<no memory space> [shape: f32[1,1], index: 7, kind: input, shape index: {}]
  %s8 = inlined_call_operand.vmem [shape: f32[1,32], index: 8, kind: input, shape index: {}]
  %s9 = inlined_call_operand.vmem [shape: f32[1,32], index: 9, kind: input, shape index: {}]
  %s10 = inlined_call_operand.vmem [shape: f32[8,1], index: 10, kind: output, shape index: {0}]
  %s11 = inlined_call_operand.hbm [shape: f32[1,32], index: 11, kind: output, shape index: {1}]
  %s12 = inlined_call_operand.hbm [shape: f32[1,32], index: 12, kind: output, shape index: {2}]
  %13 = xla_tuple %s10, %s11, %s12
  %s14 = sld [smem:[#allocation0]]
  $region66: #{lstm_actor_forward.1} parent=0
    _
  %s16 = ssub.s32 1, %s14
  %s17 = scalar_select 0, %s16, %s14
  %v18 = vstv %s7
  %19 = vst [vmem:[#allocation2] sm:$0x1] %v18
  $region1: #{lstm_actor_forward.1} parent=0
    #allocation3 [shape = 'u8[512]{0}', space=vmem, size = 0x400, scoped, tag = 'output window, operand 1, single buffered']
    #allocation4 [shape = 's32[1]{0}', space=sflag, size = 0x4, scoped, tag = 'scoped memory for lstm_actor_forward.1']
    #allocation5 [shape = 'u8[512]{0}', space=vmem, size = 0x400, scoped, tag = 'output window, operand 2, single buffered']
    #allocation6 [shape = 's32[1]{0}', space=sflag, size = 0x4, scoped, tag = 'scoped memory for lstm_actor_forward.1']
    %20 = vsyncpa [#allocation4], 0
    %21 = vsyncpa [#allocation6], 0
    // Predicated region
    $region2: #{lstm_actor_forward.1} parent=1 // pred_check
      _
    $region3: #{lstm_actor_forward.1} parent=1 // pred_check_branch
      %23 = sbr.rel (0) target = $region5
    $region4: #{lstm_actor_forward.1} parent=1 // pred_region
      _
    $region5: #{lstm_actor_forward.1} parent=1 // pred_fallthru
      _
    // Predicated region
    $region6: #{lstm_actor_forward.1} parent=1 // pred_check
      _
    $region7: #{lstm_actor_forward.1} parent=1 // pred_check_branch
      %25 = sbr.rel (0) target = $region9
    $region8: #{lstm_actor_forward.1} parent=1 // pred_region
      _
    $region9: #{lstm_actor_forward.1} parent=1 // pred_fallthru
      _
    // Predicated region
    $region10: #{lstm_actor_forward.1} parent=1 // pred_check
      _
    $region11: #{lstm_actor_forward.1} parent=1 // pred_check_branch
      %27 = sbr.rel (0) target = $region13
    $region12: #{lstm_actor_forward.1} parent=1 // pred_region
      _
    $region13: #{lstm_actor_forward.1} parent=1 // pred_fallthru
      _
    // Predicated region
    $region14: #{lstm_actor_forward.1} parent=1 // pred_check
      _
    $region15: #{lstm_actor_forward.1} parent=1 // pred_check_branch
      %29 = sbr.rel (0) target = $region17
    $region16: #{lstm_actor_forward.1} parent=1 // pred_region
      _
    $region17: #{lstm_actor_forward.1} parent=1 // pred_fallthru
      _
    // Predicated region
    $region18: #{lstm_actor_forward.1} parent=1 // pred_check
      _
    $region19: #{lstm_actor_forward.1} parent=1 // pred_check_branch
      %31 = sbr.rel (0) target = $region21
    $region20: #{lstm_actor_forward.1} parent=1 // pred_region
      _
    $region21: #{lstm_actor_forward.1} parent=1 // pred_fallthru
      _
    // Predicated region
    $region22: #{lstm_actor_forward.1} parent=1 // pred_check
      _
    $region23: #{lstm_actor_forward.1} parent=1 // pred_check_branch
      %33 = sbr.rel (0) target = $region25
    $region24: #{lstm_actor_forward.1} parent=1 // pred_region
      _
    $region25: #{lstm_actor_forward.1} parent=1 // pred_fallthru
      _
    // Predicated region
    $region26: #{lstm_actor_forward.1} parent=1 // pred_check
      _
    $region27: #{lstm_actor_forward.1} parent=1 // pred_check_branch
      %35 = sbr.rel (0) target = $region29
    $region28: #{lstm_actor_forward.1} parent=1 // pred_region
      _
    $region29: #{lstm_actor_forward.1} parent=1 // pred_fallthru
      _
    // Predicated region
    $region30: #{lstm_actor_forward.1} parent=1 // pred_check
      _
    $region31: #{lstm_actor_forward.1} parent=1 // pred_check_branch
      %37 = sbr.rel (0) target = $region33
    $region32: #{lstm_actor_forward.1} parent=1 // pred_region
      _
    $region33: #{lstm_actor_forward.1} parent=1 // pred_fallthru
      _
    // Predicated region
    $region34: #{lstm_actor_forward.1} parent=1 // pred_check
      _
    $region35: #{lstm_actor_forward.1} parent=1 // pred_check_branch
      %39 = sbr.rel (0) target = $region37
    $region36: #{lstm_actor_forward.1} parent=1 // pred_region
      _
    $region37: #{lstm_actor_forward.1} parent=1 // pred_fallthru
      _
    // Predicated region
    $region38: #{lstm_actor_forward.1} parent=1 // pred_check
      _
    $region39: #{lstm_actor_forward.1} parent=1 // pred_check_branch
      %41 = sbr.rel (0) target = $region41
    $region40: #{lstm_actor_forward.1} parent=1 // pred_region
      _
    $region41: #{lstm_actor_forward.1} parent=1 // pred_fallthru
      _
    %v43 = vld [vmem:[%s0] sm:$0xff]
    %v44 = vpack.c.bf16 %v43, %v43
    %v45 = vld [vmem:[%s1] sm:$0x3]
    %v46 = vld [vmem:[%s2] sm:$0x1]
    %v48 = vlaneseq
    %v49 = vshrl.u32 %v48, 7
    %v50 = vsub.s32 0, %v49
    %v51 = vrot.slane %v46, %v50
    %vm53 = vcmask 23552
    %v55 = vsel %vm53, %v44, 0
    %vm57 = vcmask 1040384
    %vm58 = vcmask 1041408
    %v59 = vsel %vm57, 4294967295, 65535
    %v60 = vsel %vm58, %v59, 0
    %v62 = vand.u32 %v45, %v60
    %64 = vmatprep.subr.bf16.mxu0 0
    %65 = vmatpush1.bf16.msra.mxu0 0
    %66 = vmatprep.subr.bf16.mxu0 0
    %67 = vmatpush1.bf16.msra.mxu0 0
    %68 = vmatprep.subr.bf16.mxu0 0
    %69 = vmatpush1.bf16.msra.mxu0 0
    %70 = vmatprep.subr.bf16.mxu0 0
    %71 = vmatpush1.bf16.msra.mxu0 0
    %72 = vmatprep.subr.bf16.mxu0 0
    %73 = vmatpush1.bf16.msra.mxu0 0
    %74 = vmatprep.subr.bf16.mxu0 0
    %75 = vmatpush1.bf16.msra.mxu0 0
    %76 = vmatprep.subr.bf16.mxu0 0
    %77 = vmatpush1.bf16.msra.mxu0 0
    %78 = vmatprep.subr.bf16.mxu0 0
    %79 = vmatpush1.bf16.msra.mxu0 %v62
    %80 = vmatprep.subr.bf16.mxu0 0
    %81 = vmatpush2.bf16.msra.mxu0 0
    %82 = vmatprep.subr.bf16.mxu0 0
    %83 = vmatpush2.bf16.msra.mxu0 0
    %84 = vmatprep.subr.bf16.mxu0 0
    %85 = vmatpush2.bf16.msra.mxu0 0
    %86 = vmatprep.subr.bf16.mxu0 0
    %87 = vmatpush2.bf16.msra.mxu0 0
    %88 = vmatprep.subr.bf16.mxu0 0
    %89 = vmatpush2.bf16.msra.mxu0 0
    %90 = vmatprep.subr.bf16.mxu0 0
    %91 = vmatpush2.bf16.msra.mxu0 0
    %92 = vmatprep.subr.bf16.mxu0 0
    %93 = vmatpush2.bf16.msra.mxu0 0
    %94 = vmatprep.subr.bf16.mxu0 0
    %95 = vmatpush2.bf16.msra.mxu0 0
    %96 = vmatprep.mubr.bf16.mxu0 0
    %97 = vmatmul.mubr.bf16.gmra.mxu0 %v55
    %v98 = vpop.f32.mrf.mxu0
    %v99 = vadd.f32 %v51, %v98
    %v100 = vpop.f32.mrf.mxu0
    %v101 = vpop.f32.mrf.mxu0
    %v102 = vpop.f32.mrf.mxu0
    %103 = vdwg.mxu0
    %v104 = vtanh.pop %v99
    %v105 = vpack.c.bf16 %v104, %v104
    %v106 = vld [vmem:[%s3] sm:$0xf]
    %v107 = vld [vmem:[%s3 + $0x4] sm:$0xf]
    %v108 = vld [vmem:[%s3 + $0x8] sm:$0xf]
    %v109 = vld [vmem:[%s3 + $0xc] sm:$0xf]
    %v110 = vld [vmem:[%s5] sm:$0x1]
    %v112 = vlaneseq
    %v113 = vshrl.u32 %v112, 7
    %v114 = vsub.s32 0, %v113
    %v115 = vrot.slane %v110, %v114
    %v121 = vunpack.c.l.b16 %v106
    %v122 = vunpack.c.l.b16 %v107
    %v123 = vunpack.c.l.b16 %v108
    %v124 = vunpack.c.l.b16 %v109
    %v125 = vpack.c.b16 %v122, %v121
    %v126 = vpack.c.b16 %v124, %v123
    %vm129 = vcmask 261120
    %v131 = vsel %vm129, %v105, 0
    %133 = vmatprep.subr.bf16.mxu0 0
    %134 = vmatpush1.bf16.msra.mxu0 0
    %135 = vmatprep.subr.bf16.mxu0 0
    %136 = vmatpush1.bf16.msra.mxu0 0
    %137 = vmatprep.subr.bf16.mxu0 0
    %138 = vmatpush1.bf16.msra.mxu0 0
    %139 = vmatprep.subr.bf16.mxu0 0
    %140 = vmatpush1.bf16.msra.mxu0 0
    %141 = vmatprep.subr.bf16.mxu0 0
    %142 = vmatpush1.bf16.msra.mxu0 0
    %143 = vmatprep.subr.bf16.mxu0 0
    %144 = vmatpush1.bf16.msra.mxu0 0
    %145 = vmatprep.subr.bf16.mxu0 0
    %146 = vmatpush1.bf16.msra.mxu0 %v126
    %147 = vmatprep.subr.bf16.mxu0 0
    %148 = vmatpush1.bf16.msra.mxu0 %v125
    %149 = vmatprep.subr.bf16.mxu0 0
    %150 = vmatpush2.bf16.msra.mxu0 0
    %151 = vmatprep.subr.bf16.mxu0 0
    %152 = vmatpush2.bf16.msra.mxu0 0
    %153 = vmatprep.subr.bf16.mxu0 0
    %154 = vmatpush2.bf16.msra.mxu0 0
    %155 = vmatprep.subr.bf16.mxu0 0
    %156 = vmatpush2.bf16.msra.mxu0 0
    %157 = vmatprep.subr.bf16.mxu0 0
    %158 = vmatpush2.bf16.msra.mxu0 0
    %159 = vmatprep.subr.bf16.mxu0 0
    %160 = vmatpush2.bf16.msra.mxu0 0
    %161 = vmatprep.subr.bf16.mxu0 0
    %162 = vmatpush2.bf16.msra.mxu0 0
    %163 = vmatprep.subr.bf16.mxu0 0
    %164 = vmatpush2.bf16.msra.mxu0 0
    %165 = vmatprep.mubr.bf16.mxu0 0
    %166 = vmatmul.mubr.bf16.gmra.mxu0 %v131
    %v167 = vpop.f32.mrf.mxu0
    %v168 = vadd.f32 %v115, %v167
    %v169 = vpop.f32.mrf.mxu0
    %v170 = vpop.f32.mrf.mxu0
    %v171 = vpop.f32.mrf.mxu0
    %172 = vdwg.mxu0
    %v173 = vld [vmem:[%s4] sm:$0xf]
    %v174 = vld [vmem:[%s4 + $0x4] sm:$0xf]
    %v175 = vld [vmem:[%s4 + $0x8] sm:$0xf]
    %v176 = vld [vmem:[%s4 + $0xc] sm:$0xf]
    %v177 = vld [vmem:[%s8] sm:$0x1]
    %v178 = vld [vmem:[%s9] sm:$0x1]
    %v179 = vpack.c.bf16 %v177, %v177
    %v184 = vunpack.c.l.b16 %v173
    %v185 = vunpack.c.l.b16 %v174
    %v186 = vunpack.c.l.b16 %v175
    %v187 = vunpack.c.l.b16 %v176
    %v188 = vpack.c.b16 %v185, %v184
    %v189 = vpack.c.b16 %v187, %v186
    %v193 = vsel %vm129, %v179, 0
    %195 = vmatprep.subr.bf16.mxu0 0
    %196 = vmatpush1.bf16.msra.mxu0 0
    %197 = vmatprep.subr.bf16.mxu0 0
    %198 = vmatpush1.bf16.msra.mxu0 0
    %199 = vmatprep.subr.bf16.mxu0 0
    %200 = vmatpush1.bf16.msra.mxu0 0
    %201 = vmatprep.subr.bf16.mxu0 0
    %202 = vmatpush1.bf16.msra.mxu0 0
    %203 = vmatprep.subr.bf16.mxu0 0
    %204 = vmatpush1.bf16.msra.mxu0 0
    %205 = vmatprep.subr.bf16.mxu0 0
    %206 = vmatpush1.bf16.msra.mxu0 0
    %207 = vmatprep.subr.bf16.mxu0 0
    %208 = vmatpush1.bf16.msra.mxu0 %v189
    %209 = vmatprep.subr.bf16.mxu0 0
    %210 = vmatpush1.bf16.msra.mxu0 %v188
    %211 = vmatprep.subr.bf16.mxu0 0
    %212 = vmatpush2.bf16.msra.mxu0 0
    %213 = vmatprep.subr.bf16.mxu0 0
    %214 = vmatpush2.bf16.msra.mxu0 0
    %215 = vmatprep.subr.bf16.mxu0 0
    %216 = vmatpush2.bf16.msra.mxu0 0
    %217 = vmatprep.subr.bf16.mxu0 0
    %218 = vmatpush2.bf16.msra.mxu0 0
    %219 = vmatprep.subr.bf16.mxu0 0
    %220 = vmatpush2.bf16.msra.mxu0 0
    %221 = vmatprep.subr.bf16.mxu0 0
    %222 = vmatpush2.bf16.msra.mxu0 0
    %223 = vmatprep.subr.bf16.mxu0 0
    %224 = vmatpush2.bf16.msra.mxu0 0
    %225 = vmatprep.subr.bf16.mxu0 0
    %226 = vmatpush2.bf16.msra.mxu0 0
    %227 = vmatprep.mubr.bf16.mxu0 0
    %228 = vmatmul.mubr.bf16.gmra.mxu0 %v193
    %v229 = vpop.f32.mrf.mxu0
    %v230 = vadd.f32 0.0, %v229
    %v231 = vpop.f32.mrf.mxu0
    %v232 = vpop.f32.mrf.mxu0
    %v233 = vpop.f32.mrf.mxu0
    %234 = vdwg.mxu0
    %v235 = vadd.f32 %v168, %v230
    %v236 = vxor.u32 %v235, 2147483648
    %v237 = vmul.f32 %v236, 1.442695
    %v238 = vpow.pop %v237
    %v239 = vadd.f32 %v238, 1.0
    %v240 = vrcp.pop %v239
    %v241 = vmul.f32 1.0, %v240
    %v242 = vtanh.pop %v235
    %v244 = vlaneseq
    %v245 = vshrl.u32 %v244, 7
    %v246 = vsub.s32 0, %v245
    %v247 = vrot.slane %v178, %v246
    %248 = vrot.lane.b32.xlu0 %v247, 32
    %v249 = vpop.permute.xlu0 %248
    %v251 = vmul.f32 %v241, %v249
    %253 = vrot.lane.b32.xlu0 %v242, 64
    %v254 = vpop.permute.xlu0 %253
    %v256 = vmul.f32 %v241, %v254
    %258 = vrot.lane.b32.xlu0 %v256, 32
    %v259 = vpop.permute.xlu0 %258
    %v261 = vadd.f32 %v251, %v259
    %v262 = vtanh.pop %v261
    %264 = vrot.lane.b32.xlu0 %v262, 64
    %v265 = vpop.permute.xlu0 %264
    %v267 = vmul.f32 %v241, %v265
    %v268 = vpack.c.bf16 %v267, %v267
    %270 = vrot.lane.b32.xlu0 %v268, 32
    %v271 = vpop.permute.xlu0 %270
    %v273 = vsel %vm129, %v271, 0
    %275 = vmatprep.subr.bf16.mxu0 0
    %276 = vmatpush1.bf16.msra.mxu0 0
    %277 = vmatprep.subr.bf16.mxu0 0
    %278 = vmatpush1.bf16.msra.mxu0 0
    %279 = vmatprep.subr.bf16.mxu0 0
    %280 = vmatpush1.bf16.msra.mxu0 0
    %281 = vmatprep.subr.bf16.mxu0 0
    %282 = vmatpush1.bf16.msra.mxu0 0
    %283 = vmatprep.subr.bf16.mxu0 0
    %284 = vmatpush1.bf16.msra.mxu0 0
    %285 = vmatprep.subr.bf16.mxu0 0
    %286 = vmatpush1.bf16.msra.mxu0 0
    %287 = vmatprep.subr.bf16.mxu0 0
    %288 = vmatpush1.bf16.msra.mxu0 %v189
    %289 = vmatprep.subr.bf16.mxu0 0
    %290 = vmatpush1.bf16.msra.mxu0 %v188
    %291 = vmatprep.subr.bf16.mxu0 0
    %292 = vmatpush2.bf16.msra.mxu0 0
    %293 = vmatprep.subr.bf16.mxu0 0
    %294 = vmatpush2.bf16.msra.mxu0 0
    %295 = vmatprep.subr.bf16.mxu0 0
    %296 = vmatpush2.bf16.msra.mxu0 0
    %297 = vmatprep.subr.bf16.mxu0 0
    %298 = vmatpush2.bf16.msra.mxu0 0
    %299 = vmatprep.subr.bf16.mxu0 0
    %300 = vmatpush2.bf16.msra.mxu0 0
    %301 = vmatprep.subr.bf16.mxu0 0
    %302 = vmatpush2.bf16.msra.mxu0 0
    %303 = vmatprep.subr.bf16.mxu0 0
    %304 = vmatpush2.bf16.msra.mxu0 0
    %305 = vmatprep.subr.bf16.mxu0 0
    %306 = vmatpush2.bf16.msra.mxu0 0
    %307 = vmatprep.mubr.bf16.mxu0 0
    %308 = vmatmul.mubr.bf16.gmra.mxu0 %v273
    %v309 = vpop.f32.mrf.mxu0
    %v310 = vadd.f32 0.0, %v309
    %v311 = vpop.f32.mrf.mxu0
    %v312 = vpop.f32.mrf.mxu0
    %v313 = vpop.f32.mrf.mxu0
    %314 = vdwg.mxu0
    %v316 = vrot.slane %v310, 7
    %v318 = vadd.f32 %v168, %v316
    %v319 = vxor.u32 %v318, 2147483648
    %v320 = vmul.f32 %v319, 1.442695
    %v321 = vpow.pop %v320
    %v322 = vadd.f32 %v321, 1.0
    %v323 = vrcp.pop %v322
    %v324 = vmul.f32 1.0, %v323
    %v325 = vtanh.pop %v318
    %v327 = vrot.slane %v261, 7
    %v329 = vmul.f32 %v324, %v327
    %331 = vrot.lane.b32.xlu0 %v325, 64
    %v332 = vpop.permute.xlu0 %331
    %v334 = vmul.f32 %v324, %v332
    %336 = vrot.lane.b32.xlu0 %v334, 32
    %v337 = vpop.permute.xlu0 %336
    %v339 = vadd.f32 %v329, %v337
    %v340 = vtanh.pop %v339
    %342 = vrot.lane.b32.xlu0 %v340, 64
    %v343 = vpop.permute.xlu0 %342
    %v345 = vmul.f32 %v324, %v343
    %v346 = vpack.c.bf16 %v345, %v345
    %v348 = vshrl.u32 %v346, 16
    %350 = vrot.lane.b32.xlu0 %v348, 32
    %v351 = vpop.permute.xlu0 %350
    %v353 = vsel %vm129, %v351, 0
    %355 = vmatprep.subr.bf16.mxu0 0
    %356 = vmatpush1.bf16.msra.mxu0 0
    %357 = vmatprep.subr.bf16.mxu0 0
    %358 = vmatpush1.bf16.msra.mxu0 0
    %359 = vmatprep.subr.bf16.mxu0 0
    %360 = vmatpush1.bf16.msra.mxu0 0
    %361 = vmatprep.subr.bf16.mxu0 0
    %362 = vmatpush1.bf16.msra.mxu0 0
    %363 = vmatprep.subr.bf16.mxu0 0
    %364 = vmatpush1.bf16.msra.mxu0 0
    %365 = vmatprep.subr.bf16.mxu0 0
    %366 = vmatpush1.bf16.msra.mxu0 0
    %367 = vmatprep.subr.bf16.mxu0 0
    %368 = vmatpush1.bf16.msra.mxu0 %v189
    %369 = vmatprep.subr.bf16.mxu0 0
    %370 = vmatpush1.bf16.msra.mxu0 %v188
    %371 = vmatprep.subr.bf16.mxu0 0
    %372 = vmatpush2.bf16.msra.mxu0 0
    %373 = vmatprep.subr.bf16.mxu0 0
    %374 = vmatpush2.bf16.msra.mxu0 0
    %375 = vmatprep.subr.bf16.mxu0 0
    %376 = vmatpush2.bf16.msra.mxu0 0
    %377 = vmatprep.subr.bf16.mxu0 0
    %378 = vmatpush2.bf16.msra.mxu0 0
    %379 = vmatprep.subr.bf16.mxu0 0
    %380 = vmatpush2.bf16.msra.mxu0 0
    %381 = vmatprep.subr.bf16.mxu0 0
    %382 = vmatpush2.bf16.msra.mxu0 0
    %383 = vmatprep.subr.bf16.mxu0 0
    %384 = vmatpush2.bf16.msra.mxu0 0
    %385 = vmatprep.subr.bf16.mxu0 0
    %386 = vmatpush2.bf16.msra.mxu0 0
    %387 = vmatprep.mubr.bf16.mxu0 0
    %388 = vmatmul.mubr.bf16.gmra.mxu0 %v353
    %v389 = vpop.f32.mrf.mxu0
    %v390 = vadd.f32 0.0, %v389
    %v391 = vpop.f32.mrf.mxu0
    %v392 = vpop.f32.mrf.mxu0
    %v393 = vpop.f32.mrf.mxu0
    %394 = vdwg.mxu0
    %v396 = vrot.slane %v390, 6
    %v398 = vadd.f32 %v168, %v396
    %v399 = vxor.u32 %v398, 2147483648
    %v400 = vmul.f32 %v399, 1.442695
    %v401 = vpow.pop %v400
    %v402 = vadd.f32 %v401, 1.0
    %v403 = vrcp.pop %v402
    %v404 = vmul.f32 1.0, %v403
    %v405 = vtanh.pop %v398
    %v407 = vrot.slane %v339, 7
    %v409 = vmul.f32 %v404, %v407
    %411 = vrot.lane.b32.xlu0 %v405, 64
    %v412 = vpop.permute.xlu0 %411
    %v414 = vmul.f32 %v404, %v412
    %416 = vrot.lane.b32.xlu0 %v414, 32
    %v417 = vpop.permute.xlu0 %416
    %v419 = vadd.f32 %v409, %v417
    %v420 = vtanh.pop %v419
    %422 = vrot.lane.b32.xlu0 %v420, 64
    %v423 = vpop.permute.xlu0 %422
    %v425 = vmul.f32 %v404, %v423
    %v426 = vpack.c.bf16 %v425, %v425
    %v428 = vrot.slane %v426, 1
    %429 = vrot.lane.b32.xlu0 %v428, 32
    %v430 = vpop.permute.xlu0 %429
    %v432 = vsel %vm129, %v430, 0
    %434 = vmatprep.subr.bf16.mxu0 0
    %435 = vmatpush1.bf16.msra.mxu0 0
    %436 = vmatprep.subr.bf16.mxu0 0
    %437 = vmatpush1.bf16.msra.mxu0 0
    %438 = vmatprep.subr.bf16.mxu0 0
    %439 = vmatpush1.bf16.msra.mxu0 0
    %440 = vmatprep.subr.bf16.mxu0 0
    %441 = vmatpush1.bf16.msra.mxu0 0
    %442 = vmatprep.subr.bf16.mxu0 0
    %443 = vmatpush1.bf16.msra.mxu0 0
    %444 = vmatprep.subr.bf16.mxu0 0
    %445 = vmatpush1.bf16.msra.mxu0 0
    %446 = vmatprep.subr.bf16.mxu0 0
    %447 = vmatpush1.bf16.msra.mxu0 %v189
    %448 = vmatprep.subr.bf16.mxu0 0
    %449 = vmatpush1.bf16.msra.mxu0 %v188
    %450 = vmatprep.subr.bf16.mxu0 0
    %451 = vmatpush2.bf16.msra.mxu0 0
    %452 = vmatprep.subr.bf16.mxu0 0
    %453 = vmatpush2.bf16.msra.mxu0 0
    %454 = vmatprep.subr.bf16.mxu0 0
    %455 = vmatpush2.bf16.msra.mxu0 0
    %456 = vmatprep.subr.bf16.mxu0 0
    %457 = vmatpush2.bf16.msra.mxu0 0
    %458 = vmatprep.subr.bf16.mxu0 0
    %459 = vmatpush2.bf16.msra.mxu0 0
    %460 = vmatprep.subr.bf16.mxu0 0
    %461 = vmatpush2.bf16.msra.mxu0 0
    %462 = vmatprep.subr.bf16.mxu0 0
    %463 = vmatpush2.bf16.msra.mxu0 0
    %464 = vmatprep.subr.bf16.mxu0 0
    %465 = vmatpush2.bf16.msra.mxu0 0
    %466 = vmatprep.mubr.bf16.mxu0 0
    %467 = vmatmul.mubr.bf16.gmra.mxu0 %v432
    %v468 = vpop.f32.mrf.mxu0
    %v469 = vadd.f32 0.0, %v468
    %v470 = vpop.f32.mrf.mxu0
    %v471 = vpop.f32.mrf.mxu0
    %v472 = vpop.f32.mrf.mxu0
    %473 = vdwg.mxu0
    %v475 = vrot.slane %v469, 5
    %v477 = vadd.f32 %v168, %v475
    %v478 = vxor.u32 %v477, 2147483648
    %v479 = vmul.f32 %v478, 1.442695
    %v480 = vpow.pop %v479
    %v481 = vadd.f32 %v480, 1.0
    %v482 = vrcp.pop %v481
    %v483 = vmul.f32 1.0, %v482
    %v484 = vtanh.pop %v477
    %v486 = vrot.slane %v419, 7
    %v488 = vmul.f32 %v483, %v486
    %490 = vrot.lane.b32.xlu0 %v484, 64
    %v491 = vpop.permute.xlu0 %490
    %v493 = vmul.f32 %v483, %v491
    %495 = vrot.lane.b32.xlu0 %v493, 32
    %v496 = vpop.permute.xlu0 %495
    %v498 = vadd.f32 %v488, %v496
    %v499 = vtanh.pop %v498
    %501 = vrot.lane.b32.xlu0 %v499, 64
    %v502 = vpop.permute.xlu0 %501
    %v504 = vmul.f32 %v483, %v502
    %v505 = vpack.c.bf16 %v504, %v504
    %v507 = vshrl.u32 %v505, 16
    %v509 = vrot.slane %v507, 1
    %510 = vrot.lane.b32.xlu0 %v509, 32
    %v511 = vpop.permute.xlu0 %510
    %v513 = vsel %vm129, %v511, 0
    %515 = vmatprep.subr.bf16.mxu0 0
    %516 = vmatpush1.bf16.msra.mxu0 0
    %517 = vmatprep.subr.bf16.mxu0 0
    %518 = vmatpush1.bf16.msra.mxu0 0
    %519 = vmatprep.subr.bf16.mxu0 0
    %520 = vmatpush1.bf16.msra.mxu0 0
    %521 = vmatprep.subr.bf16.mxu0 0
    %522 = vmatpush1.bf16.msra.mxu0 0
    %523 = vmatprep.subr.bf16.mxu0 0
    %524 = vmatpush1.bf16.msra.mxu0 0
    %525 = vmatprep.subr.bf16.mxu0 0
    %526 = vmatpush1.bf16.msra.mxu0 0
    %527 = vmatprep.subr.bf16.mxu0 0
    %528 = vmatpush1.bf16.msra.mxu0 %v189
    %529 = vmatprep.subr.bf16.mxu0 0
    %530 = vmatpush1.bf16.msra.mxu0 %v188
    %531 = vmatprep.subr.bf16.mxu0 0
    %532 = vmatpush2.bf16.msra.mxu0 0
    %533 = vmatprep.subr.bf16.mxu0 0
    %534 = vmatpush2.bf16.msra.mxu0 0
    %535 = vmatprep.subr.bf16.mxu0 0
    %536 = vmatpush2.bf16.msra.mxu0 0
    %537 = vmatprep.subr.bf16.mxu0 0
    %538 = vmatpush2.bf16.msra.mxu0 0
    %539 = vmatprep.subr.bf16.mxu0 0
    %540 = vmatpush2.bf16.msra.mxu0 0
    %541 = vmatprep.subr.bf16.mxu0 0
    %542 = vmatpush2.bf16.msra.mxu0 0
    %543 = vmatprep.subr.bf16.mxu0 0
    %544 = vmatpush2.bf16.msra.mxu0 0
    %545 = vmatprep.subr.bf16.mxu0 0
    %546 = vmatpush2.bf16.msra.mxu0 0
    %547 = vmatprep.mubr.bf16.mxu0 0
    %548 = vmatmul.mubr.bf16.gmra.mxu0 %v513
    %v549 = vpop.f32.mrf.mxu0
    %v550 = vadd.f32 0.0, %v549
    %v551 = vpop.f32.mrf.mxu0
    %v552 = vpop.f32.mrf.mxu0
    %v553 = vpop.f32.mrf.mxu0
    %554 = vdwg.mxu0
    %v556 = vrot.slane %v550, 4
    %v558 = vadd.f32 %v168, %v556
    %v559 = vxor.u32 %v558, 2147483648
    %v560 = vmul.f32 %v559, 1.442695
    %v561 = vpow.pop %v560
    %v562 = vadd.f32 %v561, 1.0
    %v563 = vrcp.pop %v562
    %v564 = vmul.f32 1.0, %v563
    %v565 = vtanh.pop %v558
    %v567 = vrot.slane %v498, 7
    %v569 = vmul.f32 %v564, %v567
    %571 = vrot.lane.b32.xlu0 %v565, 64
    %v572 = vpop.permute.xlu0 %571
    %v574 = vmul.f32 %v564, %v572
    %576 = vrot.lane.b32.xlu0 %v574, 32
    %v577 = vpop.permute.xlu0 %576
    %v579 = vadd.f32 %v569, %v577
    %v580 = vtanh.pop %v579
    %582 = vrot.lane.b32.xlu0 %v580, 64
    %v583 = vpop.permute.xlu0 %582
    %v585 = vmul.f32 %v564, %v583
    %v586 = vpack.c.bf16 %v585, %v585
    %v588 = vrot.slane %v586, 2
    %589 = vrot.lane.b32.xlu0 %v588, 32
    %v590 = vpop.permute.xlu0 %589
    %v592 = vsel %vm129, %v590, 0
    %594 = vmatprep.subr.bf16.mxu0 0
    %595 = vmatpush1.bf16.msra.mxu0 0
    %596 = vmatprep.subr.bf16.mxu0 0
    %597 = vmatpush1.bf16.msra.mxu0 0
    %598 = vmatprep.subr.bf16.mxu0 0
    %599 = vmatpush1.bf16.msra.mxu0 0
    %600 = vmatprep.subr.bf16.mxu0 0
    %601 = vmatpush1.bf16.msra.mxu0 0
    %602 = vmatprep.subr.bf16.mxu0 0
    %603 = vmatpush1.bf16.msra.mxu0 0
    %604 = vmatprep.subr.bf16.mxu0 0
    %605 = vmatpush1.bf16.msra.mxu0 0
    %606 = vmatprep.subr.bf16.mxu0 0
    %607 = vmatpush1.bf16.msra.mxu0 %v189
    %608 = vmatprep.subr.bf16.mxu0 0
    %609 = vmatpush1.bf16.msra.mxu0 %v188
    %610 = vmatprep.subr.bf16.mxu0 0
    %611 = vmatpush2.bf16.msra.mxu0 0
    %612 = vmatprep.subr.bf16.mxu0 0
    %613 = vmatpush2.bf16.msra.mxu0 0
    %614 = vmatprep.subr.bf16.mxu0 0
    %615 = vmatpush2.bf16.msra.mxu0 0
    %616 = vmatprep.subr.bf16.mxu0 0
    %617 = vmatpush2.bf16.msra.mxu0 0
    %618 = vmatprep.subr.bf16.mxu0 0
    %619 = vmatpush2.bf16.msra.mxu0 0
    %620 = vmatprep.subr.bf16.mxu0 0
    %621 = vmatpush2.bf16.msra.mxu0 0
    %622 = vmatprep.subr.bf16.mxu0 0
    %623 = vmatpush2.bf16.msra.mxu0 0
    %624 = vmatprep.subr.bf16.mxu0 0
    %625 = vmatpush2.bf16.msra.mxu0 0
    %626 = vmatprep.mubr.bf16.mxu0 0
    %627 = vmatmul.mubr.bf16.gmra.mxu0 %v592
    %v628 = vpop.f32.mrf.mxu0
    %v629 = vadd.f32 0.0, %v628
    %v630 = vpop.f32.mrf.mxu0
    %v631 = vpop.f32.mrf.mxu0
    %v632 = vpop.f32.mrf.mxu0
    %633 = vdwg.mxu0
    %v635 = vrot.slane %v629, 3
    %v637 = vadd.f32 %v168, %v635
    %v638 = vxor.u32 %v637, 2147483648
    %v639 = vmul.f32 %v638, 1.442695
    %v640 = vpow.pop %v639
    %v641 = vadd.f32 %v640, 1.0
    %v642 = vrcp.pop %v641
    %v643 = vmul.f32 1.0, %v642
    %v644 = vtanh.pop %v637
    %v646 = vrot.slane %v579, 7
    %v648 = vmul.f32 %v643, %v646
    %650 = vrot.lane.b32.xlu0 %v644, 64
    %v651 = vpop.permute.xlu0 %650
    %v653 = vmul.f32 %v643, %v651
    %655 = vrot.lane.b32.xlu0 %v653, 32
    %v656 = vpop.permute.xlu0 %655
    %v658 = vadd.f32 %v648, %v656
    %v659 = vtanh.pop %v658
    %661 = vrot.lane.b32.xlu0 %v659, 64
    %v662 = vpop.permute.xlu0 %661
    %v664 = vmul.f32 %v643, %v662
    %v665 = vpack.c.bf16 %v664, %v664
    %v667 = vshrl.u32 %v665, 16
    %v669 = vrot.slane %v667, 2
    %670 = vrot.lane.b32.xlu0 %v669, 32
    %v671 = vpop.permute.xlu0 %670
    %v673 = vsel %vm129, %v671, 0
    %675 = vmatprep.subr.bf16.mxu0 0
    %676 = vmatpush1.bf16.msra.mxu0 0
    %677 = vmatprep.subr.bf16.mxu0 0
    %678 = vmatpush1.bf16.msra.mxu0 0
    %679 = vmatprep.subr.bf16.mxu0 0
    %680 = vmatpush1.bf16.msra.mxu0 0
    %681 = vmatprep.subr.bf16.mxu0 0
    %682 = vmatpush1.bf16.msra.mxu0 0
    %683 = vmatprep.subr.bf16.mxu0 0
    %684 = vmatpush1.bf16.msra.mxu0 0
    %685 = vmatprep.subr.bf16.mxu0 0
    %686 = vmatpush1.bf16.msra.mxu0 0
    %687 = vmatprep.subr.bf16.mxu0 0
    %688 = vmatpush1.bf16.msra.mxu0 %v189
    %689 = vmatprep.subr.bf16.mxu0 0
    %690 = vmatpush1.bf16.msra.mxu0 %v188
    %691 = vmatprep.subr.bf16.mxu0 0
    %692 = vmatpush2.bf16.msra.mxu0 0
    %693 = vmatprep.subr.bf16.mxu0 0
    %694 = vmatpush2.bf16.msra.mxu0 0
    %695 = vmatprep.subr.bf16.mxu0 0
    %696 = vmatpush2.bf16.msra.mxu0 0
    %697 = vmatprep.subr.bf16.mxu0 0
    %698 = vmatpush2.bf16.msra.mxu0 0
    %699 = vmatprep.subr.bf16.mxu0 0
    %700 = vmatpush2.bf16.msra.mxu0 0
    %701 = vmatprep.subr.bf16.mxu0 0
    %702 = vmatpush2.bf16.msra.mxu0 0
    %703 = vmatprep.subr.bf16.mxu0 0
    %704 = vmatpush2.bf16.msra.mxu0 0
    %705 = vmatprep.subr.bf16.mxu0 0
    %706 = vmatpush2.bf16.msra.mxu0 0
    %707 = vmatprep.mubr.bf16.mxu0 0
    %708 = vmatmul.mubr.bf16.gmra.mxu0 %v673
    %v709 = vpop.f32.mrf.mxu0
    %v710 = vadd.f32 0.0, %v709
    %v711 = vpop.f32.mrf.mxu0
    %v712 = vpop.f32.mrf.mxu0
    %v713 = vpop.f32.mrf.mxu0
    %714 = vdwg.mxu0
    %v716 = vrot.slane %v710, 2
    %v718 = vadd.f32 %v168, %v716
    %v719 = vxor.u32 %v718, 2147483648
    %v720 = vmul.f32 %v719, 1.442695
    %v721 = vpow.pop %v720
    %v722 = vadd.f32 %v721, 1.0
    %v723 = vrcp.pop %v722
    %v724 = vmul.f32 1.0, %v723
    %v725 = vtanh.pop %v718
    %v727 = vrot.slane %v658, 7
    %v729 = vmul.f32 %v724, %v727
    %731 = vrot.lane.b32.xlu0 %v725, 64
    %v732 = vpop.permute.xlu0 %731
    %v734 = vmul.f32 %v724, %v732
    %736 = vrot.lane.b32.xlu0 %v734, 32
    %v737 = vpop.permute.xlu0 %736
    %v739 = vadd.f32 %v729, %v737
    %v740 = vtanh.pop %v739
    %742 = vrot.lane.b32.xlu0 %v740, 64
    %v743 = vpop.permute.xlu0 %742
    %v745 = vmul.f32 %v724, %v743
    %v746 = vpack.c.bf16 %v745, %v745
    %v748 = vrot.slane %v746, 3
    %749 = vrot.lane.b32.xlu0 %v748, 32
    %v750 = vpop.permute.xlu0 %749
    %v752 = vsel %vm129, %v750, 0
    %754 = vmatprep.subr.bf16.mxu0 0
    %755 = vmatpush1.bf16.msra.mxu0 0
    %756 = vmatprep.subr.bf16.mxu0 0
    %757 = vmatpush1.bf16.msra.mxu0 0
    %758 = vmatprep.subr.bf16.mxu0 0
    %759 = vmatpush1.bf16.msra.mxu0 0
    %760 = vmatprep.subr.bf16.mxu0 0
    %761 = vmatpush1.bf16.msra.mxu0 0
    %762 = vmatprep.subr.bf16.mxu0 0
    %763 = vmatpush1.bf16.msra.mxu0 0
    %764 = vmatprep.subr.bf16.mxu0 0
    %765 = vmatpush1.bf16.msra.mxu0 0
    %766 = vmatprep.subr.bf16.mxu0 0
    %767 = vmatpush1.bf16.msra.mxu0 %v189
    %768 = vmatprep.subr.bf16.mxu0 0
    %769 = vmatpush1.bf16.msra.mxu0 %v188
    %770 = vmatprep.subr.bf16.mxu0 0
    %771 = vmatpush2.bf16.msra.mxu0 0
    %772 = vmatprep.subr.bf16.mxu0 0
    %773 = vmatpush2.bf16.msra.mxu0 0
    %774 = vmatprep.subr.bf16.mxu0 0
    %775 = vmatpush2.bf16.msra.mxu0 0
    %776 = vmatprep.subr.bf16.mxu0 0
    %777 = vmatpush2.bf16.msra.mxu0 0
    %778 = vmatprep.subr.bf16.mxu0 0
    %779 = vmatpush2.bf16.msra.mxu0 0
    %780 = vmatprep.subr.bf16.mxu0 0
    %781 = vmatpush2.bf16.msra.mxu0 0
    %782 = vmatprep.subr.bf16.mxu0 0
    %783 = vmatpush2.bf16.msra.mxu0 0
    %784 = vmatprep.subr.bf16.mxu0 0
    %785 = vmatpush2.bf16.msra.mxu0 0
    %786 = vmatprep.mubr.bf16.mxu0 0
    %787 = vmatmul.mubr.bf16.gmra.mxu0 %v752
    %v788 = vpop.f32.mrf.mxu0
    %v789 = vadd.f32 0.0, %v788
    %v790 = vpop.f32.mrf.mxu0
    %v791 = vpop.f32.mrf.mxu0
    %v792 = vpop.f32.mrf.mxu0
    %793 = vdwg.mxu0
    %v795 = vrot.slane %v789, 1
    %v797 = vadd.f32 %v168, %v795
    %v798 = vxor.u32 %v797, 2147483648
    %v799 = vmul.f32 %v798, 1.442695
    %v800 = vpow.pop %v799
    %v801 = vadd.f32 %v800, 1.0
    %v802 = vrcp.pop %v801
    %v803 = vmul.f32 1.0, %v802
    %v804 = vtanh.pop %v797
    %v806 = vrot.slane %v739, 7
    %v808 = vmul.f32 %v803, %v806
    %810 = vrot.lane.b32.xlu0 %v804, 64
    %v811 = vpop.permute.xlu0 %810
    %v813 = vmul.f32 %v803, %v811
    %815 = vrot.lane.b32.xlu0 %v813, 32
    %v816 = vpop.permute.xlu0 %815
    %v818 = vadd.f32 %v808, %v816
    %v819 = vtanh.pop %v818
    %821 = vrot.lane.b32.xlu0 %v819, 64
    %v822 = vpop.permute.xlu0 %821
    %v824 = vmul.f32 %v803, %v822
    %826 = vrot.lane.b32.xlu0 %v824, 32
    %v827 = vpop.permute.xlu0 %826
    %vm829 = vcmask 261127
    %830 = vst.msk [vmem:[#allocation3 - $0x7] sm:$0x80] %vm829, %v827
    %832 = vrot.lane.b32.xlu0 %v818, 96
    %v833 = vpop.permute.xlu0 %832
    %835 = vst.msk [vmem:[#allocation5 - $0x7] sm:$0x80] %vm829, %v833
    %v836 = vsel %vm57, %v267, %v345
    %v837 = vsel %vm58, %v836, %v425
    %vm838 = vcmask 1042432
    %v839 = vsel %vm838, %v837, %v504
    %vm840 = vcmask 1043456
    %v841 = vsel %vm840, %v839, %v585
    %vm842 = vcmask 1044480
    %v843 = vsel %vm842, %v841, %v664
    %vm844 = vcmask 1045504
    %v845 = vsel %vm844, %v843, %v745
    %vm846 = vcmask 1046528
    %v847 = vsel %vm846, %v845, %v824
    %v848 = vpack.c.bf16 %v847, %v847
    %v849 = vld [vmem:[%s6] sm:$0xf]
    %v850 = vld [vmem:[%s6 + $0x4] sm:$0xf]
    %v851 = vld [vmem:[%s6 + $0x8] sm:$0xf]
    %v852 = vld [vmem:[%s6 + $0xc] sm:$0xf]
    %v853 = vld [vmem:[#allocation2] sm:$0x1]
    %v855 = vlaneseq
    %v856 = vshrl.u32 %v855, 7
    %v857 = vsub.s32 0, %v856
    %v858 = vrot.slane %v853, %v857
    %861 = vrot.lane.b32.xlu0 %v848, 32
    %v862 = vpop.permute.xlu0 %861
    %v867 = vunpack.c.l.b16 %v849
    %v868 = vunpack.c.l.b16 %v850
    %v869 = vunpack.c.l.b16 %v851
    %v870 = vunpack.c.l.b16 %v852
    %v871 = vpack.c.b16 %v868, %v867
    %v872 = vpack.c.b16 %v870, %v869
    %v876 = vsel %vm129, %v862, 0
    %878 = vmatprep.subr.bf16.mxu0 0
    %879 = vmatpush1.bf16.msra.mxu0 0
    %880 = vmatprep.subr.bf16.mxu0 0
    %881 = vmatpush1.bf16.msra.mxu0 0
    %882 = vmatprep.subr.bf16.mxu0 0
    %883 = vmatpush1.bf16.msra.mxu0 0
    %884 = vmatprep.subr.bf16.mxu0 0
    %885 = vmatpush1.bf16.msra.mxu0 0
    %886 = vmatprep.subr.bf16.mxu0 0
    %887 = vmatpush1.bf16.msra.mxu0 0
    %888 = vmatprep.subr.bf16.mxu0 0
    %889 = vmatpush1.bf16.msra.mxu0 0
    %890 = vmatprep.subr.bf16.mxu0 0
    %891 = vmatpush1.bf16.msra.mxu0 %v872
    %892 = vmatprep.subr.bf16.mxu0 0
    %893 = vmatpush1.bf16.msra.mxu0 %v871
    %894 = vmatprep.subr.bf16.mxu0 0
    %895 = vmatpush2.bf16.msra.mxu0 0
    %896 = vmatprep.subr.bf16.mxu0 0
    %897 = vmatpush2.bf16.msra.mxu0 0
    %898 = vmatprep.subr.bf16.mxu0 0
    %899 = vmatpush2.bf16.msra.mxu0 0
    %900 = vmatprep.subr.bf16.mxu0 0
    %901 = vmatpush2.bf16.msra.mxu0 0
    %902 = vmatprep.subr.bf16.mxu0 0
    %903 = vmatpush2.bf16.msra.mxu0 0
    %904 = vmatprep.subr.bf16.mxu0 0
    %905 = vmatpush2.bf16.msra.mxu0 0
    %906 = vmatprep.subr.bf16.mxu0 0
    %907 = vmatpush2.bf16.msra.mxu0 0
    %908 = vmatprep.subr.bf16.mxu0 0
    %909 = vmatpush2.bf16.msra.mxu0 0
    %910 = vmatprep.mubr.bf16.mxu0 0
    %911 = vmatmul.mubr.bf16.gmra.mxu0 %v876
    %v912 = vpop.f32.mrf.mxu0
    %v913 = vadd.f32 %v858, %v912
    %v914 = vpop.f32.mrf.mxu0
    %v915 = vpop.f32.mrf.mxu0
    %v916 = vpop.f32.mrf.mxu0
    %917 = vdwg.mxu0
    %vm918 = vcmask 7168
    %919 = vst.msk [vmem:[%s10] sm:$0xff] %vm918, %v913
    // Predicated region
    $region42: #{lstm_actor_forward.1} parent=1 // pred_check
      _
    $region43: #{lstm_actor_forward.1} parent=1 // pred_check_branch
      %921 = sbr.rel (0) target = $region45
    $region44: #{lstm_actor_forward.1} parent=1 // pred_region
      _
    $region45: #{lstm_actor_forward.1} parent=1 // pred_fallthru
      _
    // Predicated region
    $region46: #{lstm_actor_forward.1} parent=1 // pred_check
      _
    $region47: #{lstm_actor_forward.1} parent=1 // pred_check_branch
      %923 = sbr.rel (0) target = $region49
    $region48: #{lstm_actor_forward.1} parent=1 // pred_region
      %s925 = ssub.s32 16, 16
      %926 = vsyncadd [#allocation4], %s925
      %s928 = sshll.u32 [#allocation3], 4
      %s929 = int_to_ptr.vmem [resolvable:$true] %s928
      %931 = dma.vmem_to_hbm [thread:$0]  %s929, 16, %s11, [#allocation4]
    $region49: #{lstm_actor_forward.1} parent=1 // pred_fallthru
      _
    // Predicated region
    $region50: #{lstm_actor_forward.1} parent=1 // pred_check
      _
    $region51: #{lstm_actor_forward.1} parent=1 // pred_check_branch
      %933 = sbr.rel (0) target = $region53
    $region52: #{lstm_actor_forward.1} parent=1 // pred_region
      %s935 = ssub.s32 16, 16
      %936 = vsyncadd [#allocation6], %s935
      %s938 = sshll.u32 [#allocation5], 4
      %s939 = int_to_ptr.vmem [resolvable:$true] %s938
      %941 = dma.vmem_to_hbm [thread:$0]  %s939, 16, %s12, [#allocation6]
    $region53: #{lstm_actor_forward.1} parent=1 // pred_fallthru
      _
    // Predicated region
    $region54: #{lstm_actor_forward.1} parent=1 // pred_check
      _
    $region55: #{lstm_actor_forward.1} parent=1 // pred_check_branch
      %943 = sbr.rel (0) target = $region57
    $region56: #{lstm_actor_forward.1} parent=1 // pred_region
      _
    $region57: #{lstm_actor_forward.1} parent=1 // pred_fallthru
      _
    // Predicated region
    $region58: #{lstm_actor_forward.1} parent=1 // pred_check
      _
    $region59: #{lstm_actor_forward.1} parent=1 // pred_check_branch
      %945 = sbr.rel (0) target = $region61
    $region60: #{lstm_actor_forward.1} parent=1 // pred_region
      %946 = dma.done [#allocation4], 16
    $region61: #{lstm_actor_forward.1} parent=1 // pred_fallthru
      _
    // Predicated region
    $region62: #{lstm_actor_forward.1} parent=1 // pred_check
      _
    $region63: #{lstm_actor_forward.1} parent=1 // pred_check_branch
      %948 = sbr.rel (0) target = $region65
    $region64: #{lstm_actor_forward.1} parent=1 // pred_region
      %949 = dma.done [#allocation6], 16
    $region65: #{lstm_actor_forward.1} parent=1 // pred_fallthru
      _
    %950 = vsyncpa [#allocation4], 1
    %951 = vsyncpa [#allocation6], 1

</llo_original>
